<compile_context>
chip_gen: v6e
topology: v6e:2x2x1
jax: 0.10.0
libtpu: 0.0.40
codegen_flags: <defaults>
</compile_context>

<pallas_src>
import functools

import jax
import jax.numpy as jnp
from jax import lax
from jax.experimental import pallas as pl
from jax.experimental.pallas import tpu as pltpu


def _inverted_residual_kernel(
    x_ref,      # (Cin, TP)            f32 image-group slab, TP = imgs_per_block*H*W
    mask_ref,   # (9, TP)              f32 {0,1} boundary masks, one row per 3x3 tap
    w_in_ref,   # (hidden+Cout, Cin)   MXU dtype; rows [0:hidden)=s1*W1, [hidden:)=ss*Wskip
    b1_ref,     # (hidden, 1)          f32 folded BN1 bias
    wdw_ref,    # (hidden, 9)          f32 s2-folded depthwise taps, column = 3*(oy+1)+(ox+1)
    b2_ref,     # (hidden, 1)          f32 folded BN2 bias
    w3_ref,     # (Cout, hidden)       MXU dtype, s3-folded project weights
    bpr_ref,    # (Cout, 1)            f32 folded BN3 bias + skip-BN bias
    out_ref,    # (Cout, TP)           f32
    *, width,
):
    hidden = b1_ref.shape[0]
    tp = x_ref.shape[1]

    # ---- 1x1 expand conv + 1x1 skip conv: ONE fused MXU dot over the whole group ----
    xb = x_ref[...].astype(w_in_ref.dtype)      # in-kernel cast: HBM reads f32 once
    hs = jnp.dot(w_in_ref[...], xb, preferred_element_type=jnp.float32)
    h = jnp.clip(hs[:hidden, :] + b1_ref[...], 0.0, 6.0)      # BN1 bias + ReLU6 (f32)
    skip = hs[hidden:, :]                                      # (Cout, TP), skip-BN folded

    # ---- depthwise 3x3 stride-1 'same': 9 rolled taps (XLU) + precomputed edge masks ----
    mask = mask_ref[...]
    wdw = wdw_ref[...]
    acc = jnp.zeros((hidden, tp), jnp.float32)
    offsets = [(oy, ox) for oy in (-1, 0, 1) for ox in (-1, 0, 1)]
    for k, (oy, ox) in enumerate(offsets):
        shift = oy * width + ox
        if shift == 0:
            tap = h                                            # center tap: mask is all-ones
        else:
            # tap[p] = h[(p + shift) mod TP]; any lane whose tap falls outside its own
            # image (including rolls that cross an image seam or wrap the block ends)
            # is zeroed by the host-precomputed mask row.
            tap = pltpu.roll(h, (-shift) % tp, axis=1) * mask[k:k + 1, :]
        acc = acc + tap * wdw[:, k:k + 1]
    hdw = jnp.clip(acc + b2_ref[...], 0.0, 6.0)                # BN2 bias + ReLU6 (f32)

    # ---- 1x1 project conv + residual skip + fused BN biases: ONE MXU dot + add ----
    out = jnp.dot(w3_ref[...], hdw.astype(w3_ref.dtype),
                  preferred_element_type=jnp.float32) + skip + bpr_ref[...]
    out_ref[...] = out                                         # lane-dense full-width store


def inverted_residual(x_nchw, params, *, imgs_per_block=1):
    """x_nchw: (N, Cin, H, W) float32 -> (N, Cout, H, W) float32 (inference-mode BN)."""
    N, Cin, H, W = x_nchw.shape
    hidden = params["b1"].shape[0]
    Cout = params["w3"].shape[0]
    HW = H * W
    assert N % imgs_per_block == 0, "imgs_per_block must divide the batch"
    TP = imgs_per_block * HW
    assert TP % 128 == 0, "per-step lane width must stay a multiple of 128"
    n_steps = N // imgs_per_block

    # Channel-major slab: (Cin, N*HW); grid steps tile whole image groups along lanes.
    x_slab = x_nchw.reshape(N, Cin, HW).transpose(1, 0, 2).reshape(Cin, N * HW)

    # 9 per-tap boundary masks, built once on the host (constant-index_map VMEM input).
    yy, xx = jnp.divmod(jnp.arange(HW, dtype=jnp.int32), W)
    rows = []
    for oy in (-1, 0, 1):
        for ox in (-1, 0, 1):
            rows.append((yy + oy >= 0) & (yy + oy < H) & (xx + ox >= 0) & (xx + ox < W))
    mask = jnp.tile(jnp.stack(rows).astype(jnp.float32), (1, imgs_per_block))  # (9, TP)

    kernel = functools.partial(_inverted_residual_kernel, width=W)
    out_slab = pl.pallas_call(
        kernel,
        out_shape=jax.ShapeDtypeStruct((Cout, N * HW), jnp.float32),
        grid=(n_steps,),
        in_specs=[
            pl.BlockSpec((Cin, TP), lambda i: (0, i)),             # x: one image group/step
            pl.BlockSpec((9, TP), lambda i: (0, 0)),               # masks: VMEM-resident
            pl.BlockSpec((hidden + Cout, Cin), lambda i: (0, 0)),  # fused expand+skip weights
            pl.BlockSpec((hidden, 1), lambda i: (0, 0)),
            pl.BlockSpec((hidden, 9), lambda i: (0, 0)),
            pl.BlockSpec((hidden, 1), lambda i: (0, 0)),
            pl.BlockSpec((Cout, hidden), lambda i: (0, 0)),
            pl.BlockSpec((Cout, 1), lambda i: (0, 0)),
        ],
        out_specs=pl.BlockSpec((Cout, TP), lambda i: (0, i)),
        compiler_params=pltpu.CompilerParams(
            dimension_semantics=("parallel",),      # image groups are independent
            vmem_limit_bytes=48 * 1024 * 1024,      # explicit budget < v7x's 64 MiB VMEM
        ),
    )(x_slab, mask, params["w_in"], params["b1"], params["wdw"], params["b2"],
      params["w3"], params["bpr"])

    return out_slab.reshape(Cout, N, HW).transpose(1, 0, 2).reshape(N, Cout, H, W)


# ----------------------------------------------------------------------------
# Deterministic parameter construction (synthetic, no checkpoint load).
# BN folding + branch fusion happens here, on the host, once.
# ----------------------------------------------------------------------------
def make_params(key, in_channels, out_channels, expansion):
    hidden = in_channels * expansion
    eps = 1e-5
    keys = jax.random.split(key, 16)

    def bn_fold(kg, kb, km, kv, c):
        gamma = jax.random.normal(kg, (c,), jnp.float32) * 0.1 + 1.0
        beta = jax.random.normal(kb, (c,), jnp.float32) * 0.1
        mean = jax.random.normal(km, (c,), jnp.float32) * 0.1
        var = jax.random.uniform(kv, (c,), jnp.float32, 0.5, 1.5)
        scale = gamma / jnp.sqrt(var + eps)
        bias = beta - mean * scale
        return scale, bias

    # PyTorch conv weights (OIHW)
    w1_oihw = jax.random.normal(keys[0], (hidden, in_channels, 1, 1), jnp.float32) * 0.1
    wdw_oihw = jax.random.normal(keys[1], (hidden, 1, 3, 3), jnp.float32) * 0.1
    w3_oihw = jax.random.normal(keys[2], (out_channels, hidden, 1, 1), jnp.float32) * 0.1
    ws_oihw = jax.random.normal(keys[3], (out_channels, in_channels, 1, 1), jnp.float32) * 0.1

    s1, b1 = bn_fold(keys[4], keys[5], keys[6], keys[7], hidden)
    s2, b2 = bn_fold(keys[8], keys[9], keys[10], keys[11], hidden)
    s3, b3 = bn_fold(keys[12], keys[13], keys[14], keys[15], out_channels)
    ks = jax.random.split(keys[15], 4)
    ss, bs = bn_fold(ks[0], ks[1], ks[2], ks[3], out_channels)

    w1 = w1_oihw[:, :, 0, 0]                        # (hidden, Cin)
    ws = ws_oihw[:, :, 0, 0]                        # (Cout, Cin)
    w3 = w3_oihw[:, :, 0, 0]                        # (Cout, hidden)
    wdw = wdw_oihw[:, 0, :, :].reshape(hidden, 9)   # (hidden, 9), col = 3*(oy+1)+(ox+1)

    params = {
        # expand conv (BN1-scaled) stacked on top of skip conv (skip-BN-scaled)
        "w_in": jnp.concatenate([s1[:, None] * w1, ss[:, None] * ws], axis=0),
        "b1": b1[:, None],
        "wdw": wdw * s2[:, None],                   # BN2 scale folded into taps
        "b2": b2[:, None],
        "w3": s3[:, None] * w3,                     # BN3 scale folded
        "bpr": (b3 + bs)[:, None],                  # BN3 bias + skip-BN bias fused
    }
    ref_params = {
        "w1": w1_oihw, "wdw": wdw_oihw, "w3": w3_oihw, "ws": ws_oihw,
        "s1": s1, "b1": b1, "s2": s2, "b2": b2,
        "s3": s3, "b3": b3, "ss": ss, "bs": bs,
    }
    return params, ref_params


def cast_mxu_operands(params, dtype):
    """Cast only the matmul weights to the MXU dtype; biases / depthwise taps stay f32."""
    out = dict(params)
    out["w_in"] = params["w_in"].astype(dtype)
    out["w3"] = params["w3"].astype(dtype)
    return out


# ----------------------------------------------------------------------------
# Plain-JAX (lax.conv) reference in NCHW, mirroring PyTorch semantics (f32).
# ----------------------------------------------------------------------------
def reference(x, rp):
    def bn(y, s, b):
        return y * s[None, :, None, None] + b[None, :, None, None]

    dn = ("NCHW", "OIHW", "NCHW")
    hidden = rp["w1"].shape[0]
    out = lax.conv_general_dilated(x, rp["w1"], (1, 1), "VALID", dimension_numbers=dn)
    out = jnp.clip(bn(out, rp["s1"], rp["b1"]), 0.0, 6.0)
    out = lax.conv_general_dilated(out, rp["wdw"], (1, 1), ((1, 1), (1, 1)),
                                   dimension_numbers=dn, feature_group_count=hidden)
    out = jnp.clip(bn(out, rp["s2"], rp["b2"]), 0.0, 6.0)
    out = lax.conv_general_dilated(out, rp["w3"], (1, 1), "VALID", dimension_numbers=dn)
    out = bn(out, rp["s3"], rp["b3"])
    skip = lax.conv_general_dilated(x, rp["ws"], (1, 1), "VALID", dimension_numbers=dn)
    skip = bn(skip, rp["ss"], rp["bs"])
    return out + skip


if __name__ == "__main__":
    key = jax.random.PRNGKey(0)
    k_x, k_p = jax.random.split(key)

    N, Cin, H, W = 2, 4, 16, 16
    expansion = 2
    Cout = Cin  # stride=1, in==out -> conv skip branch active (the well-formed config)

    x = jax.random.normal(k_x, (N, Cin, H, W), jnp.float32)
    params, ref_params = make_params(k_p, Cin, Cout, expansion)
    ref = reference(x, ref_params)

    # Production path: bf16 MXU operands (fast MXU on v5e/v6e/v7x), f32 accumulation,
    # element-wise / depthwise path in f32.
    run_bf16 = jax.jit(functools.partial(
        inverted_residual, params=cast_mxu_operands(params, jnp.bfloat16)))
    out = run_bf16(x)
    jax.block_until_ready(out)
    assert out.shape == (N, Cout, H, W)
    assert jnp.allclose(out, ref, rtol=5e-2, atol=5e-2), \
        f"bf16 path max abs err {jnp.max(jnp.abs(out - ref))}"

    # Exactness check of the kernel structure: same kernel with f32 MXU operands.
    run_f32 = jax.jit(functools.partial(inverted_residual, params=params))
    out_f32 = run_f32(x)
    jax.block_until_ready(out_f32)
    assert jnp.allclose(out_f32, ref, rtol=1e-4, atol=1e-4), \
        f"f32 path max abs err {jnp.max(jnp.abs(out_f32 - ref))}"

    print("KERNEL_OK")
</pallas_src>

<mosaic_0001>
module attributes {stable_mosaic.version = 11 : i64} {
  func.func @_inverted_residual_kernel(%arg0: i32, %arg1: memref<4x256xf32, #tpu.memory_space<vmem>>, %arg2: memref<9x256xf32, #tpu.memory_space<vmem>>, %arg3: memref<12x4xbf16, #tpu.memory_space<vmem>>, %arg4: memref<8x1xf32, #tpu.memory_space<vmem>>, %arg5: memref<8x9xf32, #tpu.memory_space<vmem>>, %arg6: memref<8x1xf32, #tpu.memory_space<vmem>>, %arg7: memref<4x8xbf16, #tpu.memory_space<vmem>>, %arg8: memref<4x1xf32, #tpu.memory_space<vmem>>, %arg9: memref<4x256xf32, #tpu.memory_space<vmem>>) attributes {dimension_semantics = [#tpu.dimension_semantics<parallel>], iteration_bounds = array<i64: 2>, scalar_prefetch = 0 : i64, scratch_operands = 0 : i64, tpu.core_type = #tpu.core_type<tc>, window_params = [{transform_indices = @transform_0, window_bounds = array<i64: 4, 256>}, {pipeline_mode = #tpu.pipeline_mode<synchronous>, transform_indices = @transform_1, window_bounds = array<i64: 9, 256>}, {pipeline_mode = #tpu.pipeline_mode<synchronous>, transform_indices = @transform_2, window_bounds = array<i64: 12, 4>}, {pipeline_mode = #tpu.pipeline_mode<synchronous>, transform_indices = @transform_3, window_bounds = array<i64: 8, 1>}, {pipeline_mode = #tpu.pipeline_mode<synchronous>, transform_indices = @transform_4, window_bounds = array<i64: 8, 9>}, {pipeline_mode = #tpu.pipeline_mode<synchronous>, transform_indices = @transform_5, window_bounds = array<i64: 8, 1>}, {pipeline_mode = #tpu.pipeline_mode<synchronous>, transform_indices = @transform_6, window_bounds = array<i64: 4, 8>}, {pipeline_mode = #tpu.pipeline_mode<synchronous>, transform_indices = @transform_7, window_bounds = array<i64: 4, 1>}, {transform_indices = @transform_8, window_bounds = array<i64: 4, 256>}]} {
    %c0 = arith.constant 0 : index
    %c0_0 = arith.constant 0 : index
    %0 = vector.load %arg1[%c0, %c0_0] : memref<4x256xf32, #tpu.memory_space<vmem>>, vector<4x256xf32>
    %1 = arith.truncf %0 : vector<4x256xf32> to vector<4x256xbf16>
    %c0_1 = arith.constant 0 : index
    %c0_2 = arith.constant 0 : index
    %2 = vector.load %arg3[%c0_1, %c0_2] : memref<12x4xbf16, #tpu.memory_space<vmem>>, vector<12x4xbf16>
    %cst = arith.constant dense<0.000000e+00> : vector<12x256xf32>
    %3 = tpu.matmul %2, %1, %cst {dimension_numbers = #tpu.dot_dimension_numbers<[1], [0], [0], [1], [0, 0, 1, 1], [], []>} : vector<12x4xbf16>, vector<4x256xbf16>, vector<12x256xf32> -> vector<12x256xf32>
    %4 = vector.extract_strided_slice %3 {offsets = [0, 0], sizes = [8, 256], strides = [1, 1]} : vector<12x256xf32> to vector<8x256xf32>
    %c0_3 = arith.constant 0 : index
    %c0_4 = arith.constant 0 : index
    %5 = vector.load %arg4[%c0_3, %c0_4] : memref<8x1xf32, #tpu.memory_space<vmem>>, vector<8x1xf32>
    %6 = vector.broadcast %5 : vector<8x1xf32> to vector<8x256xf32>
    %7 = arith.addf %4, %6 : vector<8x256xf32>
    %cst_5 = arith.constant 0.000000e+00 : f32
    %cst_6 = arith.constant 6.000000e+00 : f32
    %8 = vector.broadcast %cst_5 : f32 to vector<8x256xf32>
    %9 = arith.maximumf %8, %7 : vector<8x256xf32>
    %10 = vector.broadcast %cst_6 : f32 to vector<8x256xf32>
    %11 = arith.minimumf %10, %9 : vector<8x256xf32>
    %12 = vector.extract_strided_slice %3 {offsets = [8, 0], sizes = [4, 256], strides = [1, 1]} : vector<12x256xf32> to vector<4x256xf32>
    %c0_7 = arith.constant 0 : index
    %c0_8 = arith.constant 0 : index
    %13 = vector.load %arg2[%c0_7, %c0_8] : memref<9x256xf32, #tpu.memory_space<vmem>>, vector<9x256xf32>
    %c0_9 = arith.constant 0 : index
    %c0_10 = arith.constant 0 : index
    %14 = vector.load %arg5[%c0_9, %c0_10] : memref<8x9xf32, #tpu.memory_space<vmem>>, vector<8x9xf32>
    %cst_11 = arith.constant 0.000000e+00 : f32
    %15 = vector.broadcast %cst_11 : f32 to vector<8x256xf32>
    %c17_i32 = arith.constant 17 : i32
    %16 = tpu.dynamic_rotate %11 by %c17_i32 dim 1 : vector<8x256xf32>, i32 -> vector<8x256xf32>
    %17 = vector.extract_strided_slice %13 {offsets = [0, 0], sizes = [1, 256], strides = [1, 1]} : vector<9x256xf32> to vector<1x256xf32>
    %18 = vector.broadcast %17 : vector<1x256xf32> to vector<8x256xf32>
    %19 = arith.mulf %16, %18 : vector<8x256xf32>
    %20 = vector.extract_strided_slice %14 {offsets = [0, 0], sizes = [8, 1], strides = [1, 1]} : vector<8x9xf32> to vector<8x1xf32>
    %21 = vector.broadcast %20 : vector<8x1xf32> to vector<8x256xf32>
    %22 = arith.mulf %19, %21 : vector<8x256xf32>
    %23 = arith.addf %15, %22 : vector<8x256xf32>
    %c16_i32 = arith.constant 16 : i32
    %24 = tpu.dynamic_rotate %11 by %c16_i32 dim 1 : vector<8x256xf32>, i32 -> vector<8x256xf32>
    %25 = vector.extract_strided_slice %13 {offsets = [1, 0], sizes = [1, 256], strides = [1, 1]} : vector<9x256xf32> to vector<1x256xf32>
    %26 = vector.broadcast %25 : vector<1x256xf32> to vector<8x256xf32>
    %27 = arith.mulf %24, %26 : vector<8x256xf32>
    %28 = vector.extract_strided_slice %14 {offsets = [0, 1], sizes = [8, 1], strides = [1, 1]} : vector<8x9xf32> to vector<8x1xf32>
    %29 = vector.broadcast %28 : vector<8x1xf32> to vector<8x256xf32>
    %30 = arith.mulf %27, %29 : vector<8x256xf32>
    %31 = arith.addf %23, %30 : vector<8x256xf32>
    %c15_i32 = arith.constant 15 : i32
    %32 = tpu.dynamic_rotate %11 by %c15_i32 dim 1 : vector<8x256xf32>, i32 -> vector<8x256xf32>
    %33 = vector.extract_strided_slice %13 {offsets = [2, 0], sizes = [1, 256], strides = [1, 1]} : vector<9x256xf32> to vector<1x256xf32>
    %34 = vector.broadcast %33 : vector<1x256xf32> to vector<8x256xf32>
    %35 = arith.mulf %32, %34 : vector<8x256xf32>
    %36 = vector.extract_strided_slice %14 {offsets = [0, 2], sizes = [8, 1], strides = [1, 1]} : vector<8x9xf32> to vector<8x1xf32>
    %37 = vector.broadcast %36 : vector<8x1xf32> to vector<8x256xf32>
    %38 = arith.mulf %35, %37 : vector<8x256xf32>
    %39 = arith.addf %31, %38 : vector<8x256xf32>
    %c1_i32 = arith.constant 1 : i32
    %40 = tpu.dynamic_rotate %11 by %c1_i32 dim 1 : vector<8x256xf32>, i32 -> vector<8x256xf32>
    %41 = vector.extract_strided_slice %13 {offsets = [3, 0], sizes = [1, 256], strides = [1, 1]} : vector<9x256xf32> to vector<1x256xf32>
    %42 = vector.broadcast %41 : vector<1x256xf32> to vector<8x256xf32>
    %43 = arith.mulf %40, %42 : vector<8x256xf32>
    %44 = vector.extract_strided_slice %14 {offsets = [0, 3], sizes = [8, 1], strides = [1, 1]} : vector<8x9xf32> to vector<8x1xf32>
    %45 = vector.broadcast %44 : vector<8x1xf32> to vector<8x256xf32>
    %46 = arith.mulf %43, %45 : vector<8x256xf32>
    %47 = arith.addf %39, %46 : vector<8x256xf32>
    %48 = vector.extract_strided_slice %14 {offsets = [0, 4], sizes = [8, 1], strides = [1, 1]} : vector<8x9xf32> to vector<8x1xf32>
    %49 = vector.broadcast %48 : vector<8x1xf32> to vector<8x256xf32>
    %50 = arith.mulf %11, %49 : vector<8x256xf32>
    %51 = arith.addf %47, %50 : vector<8x256xf32>
    %c255_i32 = arith.constant 255 : i32
    %52 = tpu.dynamic_rotate %11 by %c255_i32 dim 1 : vector<8x256xf32>, i32 -> vector<8x256xf32>
    %53 = vector.extract_strided_slice %13 {offsets = [5, 0], sizes = [1, 256], strides = [1, 1]} : vector<9x256xf32> to vector<1x256xf32>
    %54 = vector.broadcast %53 : vector<1x256xf32> to vector<8x256xf32>
    %55 = arith.mulf %52, %54 : vector<8x256xf32>
    %56 = vector.extract_strided_slice %14 {offsets = [0, 5], sizes = [8, 1], strides = [1, 1]} : vector<8x9xf32> to vector<8x1xf32>
    %57 = vector.broadcast %56 : vector<8x1xf32> to vector<8x256xf32>
    %58 = arith.mulf %55, %57 : vector<8x256xf32>
    %59 = arith.addf %51, %58 : vector<8x256xf32>
    %c241_i32 = arith.constant 241 : i32
    %60 = tpu.dynamic_rotate %11 by %c241_i32 dim 1 : vector<8x256xf32>, i32 -> vector<8x256xf32>
    %61 = vector.extract_strided_slice %13 {offsets = [6, 0], sizes = [1, 256], strides = [1, 1]} : vector<9x256xf32> to vector<1x256xf32>
    %62 = vector.broadcast %61 : vector<1x256xf32> to vector<8x256xf32>
    %63 = arith.mulf %60, %62 : vector<8x256xf32>
    %64 = vector.extract_strided_slice %14 {offsets = [0, 6], sizes = [8, 1], strides = [1, 1]} : vector<8x9xf32> to vector<8x1xf32>
    %65 = vector.broadcast %64 : vector<8x1xf32> to vector<8x256xf32>
    %66 = arith.mulf %63, %65 : vector<8x256xf32>
    %67 = arith.addf %59, %66 : vector<8x256xf32>
    %c240_i32 = arith.constant 240 : i32
    %68 = tpu.dynamic_rotate %11 by %c240_i32 dim 1 : vector<8x256xf32>, i32 -> vector<8x256xf32>
    %69 = vector.extract_strided_slice %13 {offsets = [7, 0], sizes = [1, 256], strides = [1, 1]} : vector<9x256xf32> to vector<1x256xf32>
    %70 = vector.broadcast %69 : vector<1x256xf32> to vector<8x256xf32>
    %71 = arith.mulf %68, %70 : vector<8x256xf32>
    %72 = vector.extract_strided_slice %14 {offsets = [0, 7], sizes = [8, 1], strides = [1, 1]} : vector<8x9xf32> to vector<8x1xf32>
    %73 = vector.broadcast %72 : vector<8x1xf32> to vector<8x256xf32>
    %74 = arith.mulf %71, %73 : vector<8x256xf32>
    %75 = arith.addf %67, %74 : vector<8x256xf32>
    %c239_i32 = arith.constant 239 : i32
    %76 = tpu.dynamic_rotate %11 by %c239_i32 dim 1 : vector<8x256xf32>, i32 -> vector<8x256xf32>
    %77 = vector.extract_strided_slice %13 {offsets = [8, 0], sizes = [1, 256], strides = [1, 1]} : vector<9x256xf32> to vector<1x256xf32>
    %78 = vector.broadcast %77 : vector<1x256xf32> to vector<8x256xf32>
    %79 = arith.mulf %76, %78 : vector<8x256xf32>
    %80 = vector.extract_strided_slice %14 {offsets = [0, 8], sizes = [8, 1], strides = [1, 1]} : vector<8x9xf32> to vector<8x1xf32>
    %81 = vector.broadcast %80 : vector<8x1xf32> to vector<8x256xf32>
    %82 = arith.mulf %79, %81 : vector<8x256xf32>
    %83 = arith.addf %75, %82 : vector<8x256xf32>
    %c0_12 = arith.constant 0 : index
    %c0_13 = arith.constant 0 : index
    %84 = vector.load %arg6[%c0_12, %c0_13] : memref<8x1xf32, #tpu.memory_space<vmem>>, vector<8x1xf32>
    %85 = vector.broadcast %84 : vector<8x1xf32> to vector<8x256xf32>
    %86 = arith.addf %83, %85 : vector<8x256xf32>
    %cst_14 = arith.constant 0.000000e+00 : f32
    %cst_15 = arith.constant 6.000000e+00 : f32
    %87 = vector.broadcast %cst_14 : f32 to vector<8x256xf32>
    %88 = arith.maximumf %87, %86 : vector<8x256xf32>
    %89 = vector.broadcast %cst_15 : f32 to vector<8x256xf32>
    %90 = arith.minimumf %89, %88 : vector<8x256xf32>
    %c0_16 = arith.constant 0 : index
    %c0_17 = arith.constant 0 : index
    %91 = vector.load %arg7[%c0_16, %c0_17] : memref<4x8xbf16, #tpu.memory_space<vmem>>, vector<4x8xbf16>
    %92 = arith.truncf %90 : vector<8x256xf32> to vector<8x256xbf16>
    %cst_18 = arith.constant dense<0.000000e+00> : vector<4x256xf32>
    %93 = tpu.matmul %91, %92, %cst_18 {dimension_numbers = #tpu.dot_dimension_numbers<[1], [0], [0], [1], [0, 0, 1, 1], [], []>} : vector<4x8xbf16>, vector<8x256xbf16>, vector<4x256xf32> -> vector<4x256xf32>
    %94 = arith.addf %93, %12 : vector<4x256xf32>
    %c0_19 = arith.constant 0 : index
    %c0_20 = arith.constant 0 : index
    %95 = vector.load %arg8[%c0_19, %c0_20] : memref<4x1xf32, #tpu.memory_space<vmem>>, vector<4x1xf32>
    %96 = vector.broadcast %95 : vector<4x1xf32> to vector<4x256xf32>
    %97 = arith.addf %94, %96 : vector<4x256xf32>
    %c0_21 = arith.constant 0 : index
    %c0_22 = arith.constant 0 : index
    %98 = vector.load %arg9[%c0_21, %c0_22] : memref<4x256xf32, #tpu.memory_space<vmem>>, vector<4x256xf32>
    tpu.vector_store %arg9[%c0_21, %c0_22], %97 {strides = array<i32>} : memref<4x256xf32, #tpu.memory_space<vmem>>, vector<4x256xf32>,
    return
  }
  func.func @transform_0(%arg0: i32) -> (i32, i32) {
    %c0_i32 = arith.constant 0 : i32
    %c0_i32_0 = arith.constant 0 : i32
    return %c0_i32, %arg0 : i32, i32
  }
  func.func @transform_1(%arg0: i32) -> (i32, i32) {
    %c0_i32 = arith.constant 0 : i32
    %c0_i32_0 = arith.constant 0 : i32
    %c0_i32_1 = arith.constant 0 : i32
    return %c0_i32, %c0_i32_0 : i32, i32
  }
  func.func @transform_2(%arg0: i32) -> (i32, i32) {
    %c0_i32 = arith.constant 0 : i32
    %c0_i32_0 = arith.constant 0 : i32
    %c0_i32_1 = arith.constant 0 : i32
    return %c0_i32, %c0_i32_0 : i32, i32
  }
  func.func @transform_3(%arg0: i32) -> (i32, i32) {
    %c0_i32 = arith.constant 0 : i32
    %c0_i32_0 = arith.constant 0 : i32
    %c0_i32_1 = arith.constant 0 : i32
    return %c0_i32, %c0_i32_0 : i32, i32
  }
  func.func @transform_4(%arg0: i32) -> (i32, i32) {
    %c0_i32 = arith.constant 0 : i32
    %c0_i32_0 = arith.constant 0 : i32
    %c0_i32_1 = arith.constant 0 : i32
    return %c0_i32, %c0_i32_0 : i32, i32
  }
  func.func @transform_5(%arg0: i32) -> (i32, i32) {
    %c0_i32 = arith.constant 0 : i32
    %c0_i32_0 = arith.constant 0 : i32
    %c0_i32_1 = arith.constant 0 : i32
    return %c0_i32, %c0_i32_0 : i32, i32
  }
  func.func @transform_6(%arg0: i32) -> (i32, i32) {
    %c0_i32 = arith.constant 0 : i32
    %c0_i32_0 = arith.constant 0 : i32
    %c0_i32_1 = arith.constant 0 : i32
    return %c0_i32, %c0_i32_0 : i32, i32
  }
  func.func @transform_7(%arg0: i32) -> (i32, i32) {
    %c0_i32 = arith.constant 0 : i32
    %c0_i32_0 = arith.constant 0 : i32
    %c0_i32_1 = arith.constant 0 : i32
    return %c0_i32, %c0_i32_0 : i32, i32
  }
  func.func @transform_8(%arg0: i32) -> (i32, i32) {
    %c0_i32 = arith.constant 0 : i32
    %c0_i32_0 = arith.constant 0 : i32
    return %c0_i32, %arg0 : i32, i32
  }
}

</mosaic_0001>

<llo_original>
// kernel: inverted_residual.1
$region0: #{inverted_residual.1}
  #allocation0 [shape = 'u32[]', space=smem, size = 0x4, offset = 0x4, fixed_abs, tag = 'smem constant byte address 0x4 - core index']
  #allocation1 [shape = 'u32[144,128]{1,0:T(1,128)}', space=vmem, size = 0x12000, scoped, tag = 'internal scratch']
  %s0 = inlined_call_operand.vmem [shape: f32[4,512], index: 0, kind: input, shape index: {}]
  %s1 = inlined_call_operand.vmem [shape: f32[9,256], index: 1, kind: input, shape index: {}]
  %s2 = inlined_call_operand.vmem [shape: bf16[12,4], index: 2, kind: input, shape index: {}]
  %s3 = inlined_call_operand.vmem [shape: f32[8,1], index: 3, kind: input, shape index: {}]
  %s4 = inlined_call_operand.vmem [shape: f32[8,9], index: 4, kind: input, shape index: {}]
  %s5 = inlined_call_operand.vmem [shape: f32[8,1], index: 5, kind: input, shape index: {}]
  %s6 = inlined_call_operand.vmem [shape: bf16[4,8], index: 6, kind: input, shape index: {}]
  %s7 = inlined_call_operand.vmem [shape: f32[4,1], index: 7, kind: input, shape index: {}]
  %s8 = inlined_call_operand.vmem [shape: f32[4,512], index: 8, kind: output, shape index: {}]
  %s9 = sld [smem:[#allocation0]]
  $region65: #{inverted_residual.1} parent=0
    _
  %s11 = ssub.s32 1, %s9
  %s12 = scalar_select 0, %s11, %s9
  loop: start=0, step=1, limit=4
  $region2: #{inverted_residual.1} parent=0 // loop_pre_header
    _
  $region3: #{inverted_residual.1} parent=0 // loop_header
    %s14 = sphi 0, %s18
    %p15 = scmp.ge.s32.totalorder %s14, 4
    %s24 = sphi 0, %s26
    %s27 = sphi 0, %s24
    %s28 = sphi 0, %s27
    %s44 = sphi 0, %s28
    %s48 = sphi 0, %s48
    %s50 = sphi 0, %s48
    %s51 = sphi 0, %s50
    %s65 = sphi 0, %s51
    %s69 = sphi 0, %s69
    %s71 = sphi 0, %s69
    %s72 = sphi 0, %s71
    %s86 = sphi 0, %s72
    %s90 = sphi 0, %s90
    %s92 = sphi 0, %s90
    %s93 = sphi 0, %s92
    %s107 = sphi 0, %s93
    %s111 = sphi 0, %s111
    %s113 = sphi 0, %s111
    %s114 = sphi 0, %s113
    %s128 = sphi 0, %s114
    %s132 = sphi 0, %s132
    %s134 = sphi 0, %s132
    %s135 = sphi 0, %s134
    %s149 = sphi 0, %s135
    %s153 = sphi 0, %s153
    %s155 = sphi 0, %s153
    %s156 = sphi 0, %s155
    %s170 = sphi 0, %s156
    %s174 = sphi 0, %s174
    %s176 = sphi 0, %s174
    %s177 = sphi 0, %s176
    %s191 = sphi 0, %s177
    %s197 = sphi 0, %s199
    %s200 = sphi 0, %s197
    %s201 = sphi 0, %s200
    %s217 = sphi 0, %s201
  $region4: #{inverted_residual.1} parent=0 // loop_header_branch
    %17 = sbr.rel (%p15) target = $region8
  $region5: #{inverted_residual.1} parent=0 // loop_body
    %s19 = ssub.s32 %s14, 1
    %s20 = ssub.s32 %s14, 2
    %s21 = sadd.s32 %s14, 1
    %s22 = ssub.s32 %s14, %s21
    %p23 = scmp.eq.s32.totalorder %s22, 0
    %s25 = sadd.s32 %s24, 1
    %s26 = scalar_select %p23, %s24, %s25
    %p29 = pneg %p23
    %p30 = scmp.eq.s32.totalorder %s14, 1
    %p31 = por %p29, %p30
    %p32 = scmp.ne.s32.totalorder %s24, %s27
    %p33 = scmp.eq.s32.totalorder %s14, 0
    %p34 = por %p32, %p33
    %p35 = scmp.ne.s32.totalorder %s24, %s27
    %p36 = scmp.eq.s32.totalorder %s19, 1
    %p37 = por %p35, %p36
    %p38 = scmp.ne.s32.totalorder %s27, %s28
    %p39 = scmp.eq.s32.totalorder %s19, 0
    %p40 = por %p38, %p39
    %p41 = scmp.ne.s32.totalorder %s27, %s28
    %p42 = scmp.eq.s32.totalorder %s20, 1
    %p43 = por %p41, %p42
    %p45 = scmp.ne.s32.totalorder %s28, %s44
    %p46 = scmp.eq.s32.totalorder %s20, 0
    %p47 = por %p45, %p46
    %s49 = sadd.s32 %s48, 1
    %p52 = scmp.eq.s32.totalorder %s14, 1
    %p53 = scmp.ne.s32.totalorder %s48, %s50
    %p54 = scmp.eq.s32.totalorder %s14, 0
    %p55 = por %p53, %p54
    %p56 = scmp.ne.s32.totalorder %s48, %s50
    %p57 = scmp.eq.s32.totalorder %s19, 1
    %p58 = por %p56, %p57
    %p59 = scmp.ne.s32.totalorder %s50, %s51
    %p60 = scmp.eq.s32.totalorder %s19, 0
    %p61 = por %p59, %p60
    %p62 = scmp.ne.s32.totalorder %s50, %s51
    %p63 = scmp.eq.s32.totalorder %s20, 1
    %p64 = por %p62, %p63
    %p66 = scmp.ne.s32.totalorder %s51, %s65
    %p67 = scmp.eq.s32.totalorder %s20, 0
    %p68 = por %p66, %p67
    %s70 = sadd.s32 %s69, 1
    %p73 = scmp.eq.s32.totalorder %s14, 1
    %p74 = scmp.ne.s32.totalorder %s69, %s71
    %p75 = scmp.eq.s32.totalorder %s14, 0
    %p76 = por %p74, %p75
    %p77 = scmp.ne.s32.totalorder %s69, %s71
    %p78 = scmp.eq.s32.totalorder %s19, 1
    %p79 = por %p77, %p78
    %p80 = scmp.ne.s32.totalorder %s71, %s72
    %p81 = scmp.eq.s32.totalorder %s19, 0
    %p82 = por %p80, %p81
    %p83 = scmp.ne.s32.totalorder %s71, %s72
    %p84 = scmp.eq.s32.totalorder %s20, 1
    %p85 = por %p83, %p84
    %p87 = scmp.ne.s32.totalorder %s72, %s86
    %p88 = scmp.eq.s32.totalorder %s20, 0
    %p89 = por %p87, %p88
    %s91 = sadd.s32 %s90, 1
    %p94 = scmp.eq.s32.totalorder %s14, 1
    %p95 = scmp.ne.s32.totalorder %s90, %s92
    %p96 = scmp.eq.s32.totalorder %s14, 0
    %p97 = por %p95, %p96
    %p98 = scmp.ne.s32.totalorder %s90, %s92
    %p99 = scmp.eq.s32.totalorder %s19, 1
    %p100 = por %p98, %p99
    %p101 = scmp.ne.s32.totalorder %s92, %s93
    %p102 = scmp.eq.s32.totalorder %s19, 0
    %p103 = por %p101, %p102
    %p104 = scmp.ne.s32.totalorder %s92, %s93
    %p105 = scmp.eq.s32.totalorder %s20, 1
    %p106 = por %p104, %p105
    %p108 = scmp.ne.s32.totalorder %s93, %s107
    %p109 = scmp.eq.s32.totalorder %s20, 0
    %p110 = por %p108, %p109
    %s112 = sadd.s32 %s111, 1
    %p115 = scmp.eq.s32.totalorder %s14, 1
    %p116 = scmp.ne.s32.totalorder %s111, %s113
    %p117 = scmp.eq.s32.totalorder %s14, 0
    %p118 = por %p116, %p117
    %p119 = scmp.ne.s32.totalorder %s111, %s113
    %p120 = scmp.eq.s32.totalorder %s19, 1
    %p121 = por %p119, %p120
    %p122 = scmp.ne.s32.totalorder %s113, %s114
    %p123 = scmp.eq.s32.totalorder %s19, 0
    %p124 = por %p122, %p123
    %p125 = scmp.ne.s32.totalorder %s113, %s114
    %p126 = scmp.eq.s32.totalorder %s20, 1
    %p127 = por %p125, %p126
    %p129 = scmp.ne.s32.totalorder %s114, %s128
    %p130 = scmp.eq.s32.totalorder %s20, 0
    %p131 = por %p129, %p130
    %s133 = sadd.s32 %s132, 1
    %p136 = scmp.eq.s32.totalorder %s14, 1
    %p137 = scmp.ne.s32.totalorder %s132, %s134
    %p138 = scmp.eq.s32.totalorder %s14, 0
    %p139 = por %p137, %p138
    %p140 = scmp.ne.s32.totalorder %s132, %s134
    %p141 = scmp.eq.s32.totalorder %s19, 1
    %p142 = por %p140, %p141
    %p143 = scmp.ne.s32.totalorder %s134, %s135
    %p144 = scmp.eq.s32.totalorder %s19, 0
    %p145 = por %p143, %p144
    %p146 = scmp.ne.s32.totalorder %s134, %s135
    %p147 = scmp.eq.s32.totalorder %s20, 1
    %p148 = por %p146, %p147
    %p150 = scmp.ne.s32.totalorder %s135, %s149
    %p151 = scmp.eq.s32.totalorder %s20, 0
    %p152 = por %p150, %p151
    %s154 = sadd.s32 %s153, 1
    %p157 = scmp.eq.s32.totalorder %s14, 1
    %p158 = scmp.ne.s32.totalorder %s153, %s155
    %p159 = scmp.eq.s32.totalorder %s14, 0
    %p160 = por %p158, %p159
    %p161 = scmp.ne.s32.totalorder %s153, %s155
    %p162 = scmp.eq.s32.totalorder %s19, 1
    %p163 = por %p161, %p162
    %p164 = scmp.ne.s32.totalorder %s155, %s156
    %p165 = scmp.eq.s32.totalorder %s19, 0
    %p166 = por %p164, %p165
    %p167 = scmp.ne.s32.totalorder %s155, %s156
    %p168 = scmp.eq.s32.totalorder %s20, 1
    %p169 = por %p167, %p168
    %p171 = scmp.ne.s32.totalorder %s156, %s170
    %p172 = scmp.eq.s32.totalorder %s20, 0
    %p173 = por %p171, %p172
    %s175 = sadd.s32 %s174, 1
    %p178 = scmp.eq.s32.totalorder %s14, 1
    %p179 = scmp.ne.s32.totalorder %s174, %s176
    %p180 = scmp.eq.s32.totalorder %s14, 0
    %p181 = por %p179, %p180
    %p182 = scmp.ne.s32.totalorder %s174, %s176
    %p183 = scmp.eq.s32.totalorder %s19, 1
    %p184 = por %p182, %p183
    %p185 = scmp.ne.s32.totalorder %s176, %s177
    %p186 = scmp.eq.s32.totalorder %s19, 0
    %p187 = por %p185, %p186
    %p188 = scmp.ne.s32.totalorder %s176, %s177
    %p189 = scmp.eq.s32.totalorder %s20, 1
    %p190 = por %p188, %p189
    %p192 = scmp.ne.s32.totalorder %s177, %s191
    %p193 = scmp.eq.s32.totalorder %s20, 0
    %p194 = por %p192, %p193
    %s195 = ssub.s32 %s14, %s21
    %p196 = scmp.eq.s32.totalorder %s195, 0
    %s198 = sadd.s32 %s197, 1
    %s199 = scalar_select %p196, %s197, %s198
    %p202 = pneg %p196
    %p203 = scmp.eq.s32.totalorder %s14, 1
    %p204 = por %p202, %p203
    %p205 = scmp.ne.s32.totalorder %s197, %s200
    %p206 = scmp.eq.s32.totalorder %s14, 0
    %p207 = por %p205, %p206
    %p208 = scmp.ne.s32.totalorder %s197, %s200
    %p209 = scmp.eq.s32.totalorder %s19, 1
    %p210 = por %p208, %p209
    %p211 = scmp.ne.s32.totalorder %s200, %s201
    %p212 = scmp.eq.s32.totalorder %s19, 0
    %p213 = por %p211, %p212
    %p214 = scmp.ne.s32.totalorder %s200, %s201
    %p215 = scmp.eq.s32.totalorder %s20, 1
    %p216 = por %p214, %p215
    %p218 = scmp.ne.s32.totalorder %s201, %s217
    %p219 = scmp.eq.s32.totalorder %s20, 0
    %p220 = por %p218, %p219
    %p221 = scmp.le.s32.totalorder 1, %s14
    %p222 = scmp.lt.s32.totalorder %s14, 3
    %p223 = pnand %p221, %p222
    %p224 = pneg %p223
    // Predicated region
    $region9: #{inverted_residual.1} parent=5 // pred_check
      _
    $region10: #{inverted_residual.1} parent=5 // pred_check_branch
      %226 = sbr.rel (%p223) target = $region12
    $region11: #{inverted_residual.1} parent=5 // pred_region
      %s227 = ssub.s32 %s14, 1
      // Predicated region
      $region13: #{inverted_residual.1} parent=11 // pred_check
        %p228 = pneg %p61
      $region14: #{inverted_residual.1} parent=11 // pred_check_branch
        %230 = sbr.rel (%p228) target = $region16
      $region15: #{inverted_residual.1} parent=11 // pred_region
        _
      $region16: #{inverted_residual.1} parent=11 // pred_fallthru
        _
      // Predicated region
      $region17: #{inverted_residual.1} parent=11 // pred_check
        %p231 = pneg %p82
      $region18: #{inverted_residual.1} parent=11 // pred_check_branch
        %233 = sbr.rel (%p231) target = $region20
      $region19: #{inverted_residual.1} parent=11 // pred_region
        _
      $region20: #{inverted_residual.1} parent=11 // pred_fallthru
        _
      // Predicated region
      $region21: #{inverted_residual.1} parent=11 // pred_check
        %p234 = pneg %p103
      $region22: #{inverted_residual.1} parent=11 // pred_check_branch
        %236 = sbr.rel (%p234) target = $region24
      $region23: #{inverted_residual.1} parent=11 // pred_region
        _
      $region24: #{inverted_residual.1} parent=11 // pred_fallthru
        _
      // Predicated region
      $region25: #{inverted_residual.1} parent=11 // pred_check
        %p237 = pneg %p124
      $region26: #{inverted_residual.1} parent=11 // pred_check_branch
        %239 = sbr.rel (%p237) target = $region28
      $region27: #{inverted_residual.1} parent=11 // pred_region
        _
      $region28: #{inverted_residual.1} parent=11 // pred_fallthru
        _
      // Predicated region
      $region29: #{inverted_residual.1} parent=11 // pred_check
        %p240 = pneg %p145
      $region30: #{inverted_residual.1} parent=11 // pred_check_branch
        %242 = sbr.rel (%p240) target = $region32
      $region31: #{inverted_residual.1} parent=11 // pred_region
        _
      $region32: #{inverted_residual.1} parent=11 // pred_fallthru
        _
      // Predicated region
      $region33: #{inverted_residual.1} parent=11 // pred_check
        %p243 = pneg %p166
      $region34: #{inverted_residual.1} parent=11 // pred_check_branch
        %245 = sbr.rel (%p243) target = $region36
      $region35: #{inverted_residual.1} parent=11 // pred_region
        _
      $region36: #{inverted_residual.1} parent=11 // pred_fallthru
        _
      // Predicated region
      $region37: #{inverted_residual.1} parent=11 // pred_check
        %p246 = pneg %p187
      $region38: #{inverted_residual.1} parent=11 // pred_check_branch
        %248 = sbr.rel (%p246) target = $region40
      $region39: #{inverted_residual.1} parent=11 // pred_region
        _
      $region40: #{inverted_residual.1} parent=11 // pred_fallthru
        _
    $region12: #{inverted_residual.1} parent=5 // pred_fallthru
      _
    %p249 = scmp.lt.s32.totalorder %s14, 2
    // Predicated region
    $region41: #{inverted_residual.1} parent=5 // pred_check
      %p250 = pneg %p249
    $region42: #{inverted_residual.1} parent=5 // pred_check_branch
      %252 = sbr.rel (%p250) target = $region44
    $region43: #{inverted_residual.1} parent=5 // pred_region
      // Predicated region
      $region45: #{inverted_residual.1} parent=43 // pred_check
        %p253 = pneg %p34
      $region46: #{inverted_residual.1} parent=43 // pred_check_branch
        %255 = sbr.rel (%p253) target = $region48
      $region47: #{inverted_residual.1} parent=43 // pred_region
        %s256 = smul.u32 2, %s14
        %p257 = scmp.lt.s32.totalorder %s256, 3
        %s258 = scalar_select %p257, %s256, 3
        %s259 = smul.addr %s258, 4
        %s260 = scalar_lea.vmem %s0, %s259
        %s261 = smul.u32 2, %s14
      $region48: #{inverted_residual.1} parent=43 // pred_fallthru
        _
    $region44: #{inverted_residual.1} parent=5 // pred_fallthru
      _
    %p262 = scmp.le.s32.totalorder 1, %s14
    %p263 = scmp.lt.s32.totalorder %s14, 3
    %p264 = pnand %p262, %p263
    %p265 = pneg %p264
    // Predicated region
    $region49: #{inverted_residual.1} parent=5 // pred_check
      _
    $region50: #{inverted_residual.1} parent=5 // pred_check_branch
      %267 = sbr.rel (%p264) target = $region52
    $region51: #{inverted_residual.1} parent=5 // pred_region
      %s268 = ssub.s32 %s14, 1
      %s269 = smul.u32 2, %s19
      %p270 = scmp.lt.s32.totalorder %s269, 3
      %s271 = scalar_select %p270, %s269, 3
      %s272 = smul.addr %s271, 4
      %s273 = scalar_lea.vmem %s0, %s272
      %p274 = pneg %p40
      %p275 = pneg %p37
      %p276 = pneg %p61
      %p277 = pneg %p58
      %p278 = pneg %p82
      %p279 = pneg %p79
      %p280 = pneg %p103
      %p281 = pneg %p100
      %p282 = pneg %p124
      %p283 = pneg %p121
      %p284 = pneg %p145
      %p285 = pneg %p142
      %p286 = pneg %p166
      %p287 = pneg %p163
      %p288 = pneg %p187
      %p289 = pneg %p184
      %p290 = pneg %p213
      %p291 = pneg %p210
      %s292 = smul.u32 2, %s19
      %p293 = scmp.lt.s32.totalorder %s292, 3
      %s294 = scalar_select %p293, %s292, 3
      %s295 = smul.addr %s294, 4
      %s296 = scalar_lea.vmem %s8, %s295
      %s297 = smul.u32 2, %s19
      %p298 = scmp.lt.s32.totalorder %s297, 3
      %s299 = scalar_select %p298, %s297, 3
      %s300 = smul.addr %s299, 4
      %s301 = scalar_lea.vmem %s0, %s300
      %s302 = smul.u32 2, %s19
      %s303 = smul.u32 2, %s19
      %p304 = scmp.lt.s32.totalorder %s303, 3
      %s305 = scalar_select %p304, %s303, 3
      %s306 = smul.addr %s305, 4
      %s307 = scalar_lea.vmem %s8, %s306
      %s308 = smul.u32 2, %s19
      %v310 = vld [vmem:[%s301] sm:$0xff]
      %v312 = vcombine.high %v310, %v310
      %v314 = vpack.c.bf16 %v310, %v310
      %v315 = vpack.c.bf16 %v312, %v312
      %v316 = vld [vmem:[%s2] sm:$0xf]
      %v317 = vld [vmem:[%s2 + $0x4] sm:$0x3]
      %v320 = vunpack.c.l.b16 %v316
      %v321 = vunpack.c.l.b16 %v317
      %v322 = vpack.c.b16 %v321, %v320
      %vm323 = vcmask 31744
      %v325 = vsel %vm323, %v322, 0
      %vm327 = vcmask 1041408
      %v329 = vsel %vm327, %v314, 0
      %v332 = vsel %vm327, %v315, 0
      %334 = vmatprep.subr.bf16.mxu0 0
      %335 = vmatpush1.bf16.msra.mxu0 0
      %336 = vmatprep.subr.bf16.mxu0 0
      %337 = vmatpush1.bf16.msra.mxu0 0
      %338 = vmatprep.subr.bf16.mxu0 0
      %339 = vmatpush1.bf16.msra.mxu0 0
      %340 = vmatprep.subr.bf16.mxu0 0
      %341 = vmatpush1.bf16.msra.mxu0 0
      %342 = vmatprep.subr.bf16.mxu0 0
      %343 = vmatpush1.bf16.msra.mxu0 0
      %344 = vmatprep.subr.bf16.mxu0 0
      %345 = vmatpush1.bf16.msra.mxu0 0
      %346 = vmatprep.subr.bf16.mxu0 0
      %347 = vmatpush1.bf16.msra.mxu0 0
      %348 = vmatprep.subr.bf16.mxu0 %v332
      %349 = vmatpush1.bf16.msra.mxu0 %v329
      %350 = vmatprep.subr.bf16.mxu0 0
      %351 = vmatpush2.bf16.msra.mxu0 0
      %352 = vmatprep.subr.bf16.mxu0 0
      %353 = vmatpush2.bf16.msra.mxu0 0
      %354 = vmatprep.subr.bf16.mxu0 0
      %355 = vmatpush2.bf16.msra.mxu0 0
      %356 = vmatprep.subr.bf16.mxu0 0
      %357 = vmatpush2.bf16.msra.mxu0 0
      %358 = vmatprep.subr.bf16.mxu0 0
      %359 = vmatpush2.bf16.msra.mxu0 0
      %360 = vmatprep.subr.bf16.mxu0 0
      %361 = vmatpush2.bf16.msra.mxu0 0
      %362 = vmatprep.subr.bf16.mxu0 0
      %363 = vmatpush2.bf16.msra.mxu0 0
      %364 = vmatprep.subr.bf16.mxu0 0
      %365 = vmatpush2.bf16.msra.mxu0 0
      %366 = vmatprep.mubr.bf16.mxu0 0
      %367 = vmatmul.mubr.bf16.gmra.mxu0 %v325
      %v368 = vpop.f32.mrf.mxu0
      %v369 = vadd.f32 0.0, %v368
      %v370 = vpop.f32.mrf.mxu0
      %v371 = vadd.f32 0.0, %v370
      %v372 = vpop.f32.mrf.mxu0
      %v373 = vadd.f32 0.0, %v372
      %v374 = vpop.f32.mrf.mxu0
      %v375 = vadd.f32 0.0, %v374
      %376 = vdwg.mxu0
      %v377 = vld [vmem:[%s3] sm:$0xff]
      %379 = vset.pattern.permute.xlu0 0
      %380 = vperm.xlu0 %379, %v377
      %v381 = vpop.permute.xlu0 %380
      %v383 = vadd.f32 %v369, %v381
      %v384 = vadd.f32 %v371, %v381
      %v385 = vmax.f32 %v383, 0.0
      %v386 = vmax.f32 %v384, 0.0
      %v387 = vmin.f32 %v385, 6.0
      %v388 = vmin.f32 %v386, 6.0
      %v389 = vld [vmem:[%s1] sm:$0xff]
      %v390 = vld [vmem:[%s1 + $0x8] sm:$0xff]
      %v391 = vld [vmem:[%s1 + $0x10] sm:$0x1]
      %v392 = vld [vmem:[%s1 + $0x18] sm:$0x1]
      %v393 = vld [vmem:[%s4] sm:$0xff]
      %394 = vrot.lane.b32.xlu0 %v387, 17
      %v395 = vpop.permute.xlu0 %394
      %396 = vrot.lane.b32.xlu0 %v388, 17
      %v397 = vpop.permute.xlu0 %396
      %v398 = vlaneseq
      %v399 = vand.u32 %v398, 127
      %vm400 = vcmp.lt.s32.totalorder %v399, 17
      %v401 = vsel %vm400, %v395, %v397
      %v402 = vsel %vm400, %v397, %v395
      %v403 = vlaneseq
      %v404 = vshrl.u32 %v403, 7
      %v405 = vsub.s32 0, %v404
      %v406 = vrot.slane %v389, %v405
      %v407 = vlaneseq
      %v408 = vshrl.u32 %v407, 7
      %v409 = vsub.s32 0, %v408
      %v410 = vrot.slane %v390, %v409
      %v411 = vmul.f32 %v402, %v406
      %v412 = vmul.f32 %v401, %v410
      %414 = vset.pattern.permute.xlu0 0
      %415 = vperm.xlu0 %414, %v393
      %v416 = vpop.permute.xlu0 %415
      %v418 = vmul.f32 %v411, %v416
      %v419 = vmul.f32 %v412, %v416
      %v420 = vadd.f32 %v418, 0.0
      %v421 = vadd.f32 %v419, 0.0
      %422 = vrot.lane.b32.xlu0 %v387, 16
      %v423 = vpop.permute.xlu0 %422
      %424 = vrot.lane.b32.xlu0 %v388, 16
      %v425 = vpop.permute.xlu0 %424
      %vm426 = vcmp.lt.s32.totalorder %v399, 16
      %v427 = vsel %vm426, %v423, %v425
      %v428 = vsel %vm426, %v425, %v423
      %v429 = vlaneseq
      %v430 = vshrl.u32 %v429, 7
      %v431 = vsub.s32 1, %v430
      %v432 = vrot.slane %v389, %v431
      %v433 = vlaneseq
      %v434 = vshrl.u32 %v433, 7
      %v435 = vsub.s32 1, %v434
      %v436 = vrot.slane %v390, %v435
      %v437 = vmul.f32 %v428, %v432
      %v438 = vmul.f32 %v427, %v436
      %439 = vset.pattern.permute.xlu0 1
      %440 = vperm.xlu0 %439, %v393
      %v441 = vpop.permute.xlu0 %440
      %v443 = vmul.f32 %v437, %v441
      %v444 = vmul.f32 %v438, %v441
      %v445 = vadd.f32 %v420, %v443
      %v446 = vadd.f32 %v421, %v444
      %447 = vrot.lane.b32.xlu0 %v387, 15
      %v448 = vpop.permute.xlu0 %447
      %449 = vrot.lane.b32.xlu0 %v388, 15
      %v450 = vpop.permute.xlu0 %449
      %vm451 = vcmp.lt.s32.totalorder %v399, 15
      %v452 = vsel %vm451, %v448, %v450
      %v453 = vsel %vm451, %v450, %v448
      %v454 = vlaneseq
      %v455 = vshrl.u32 %v454, 7
      %v456 = vsub.s32 2, %v455
      %v457 = vrot.slane %v389, %v456
      %v458 = vlaneseq
      %v459 = vshrl.u32 %v458, 7
      %v460 = vsub.s32 2, %v459
      %v461 = vrot.slane %v390, %v460
      %v462 = vmul.f32 %v453, %v457
      %v463 = vmul.f32 %v452, %v461
      %464 = vset.pattern.permute.xlu0 2
      %465 = vperm.xlu0 %464, %v393
      %v466 = vpop.permute.xlu0 %465
      %v468 = vmul.f32 %v462, %v466
      %v469 = vmul.f32 %v463, %v466
      %v470 = vadd.f32 %v445, %v468
      %v471 = vadd.f32 %v446, %v469
      %472 = vrot.lane.b32.xlu0 %v387, 1
      %v473 = vpop.permute.xlu0 %472
      %474 = vrot.lane.b32.xlu0 %v388, 1
      %v475 = vpop.permute.xlu0 %474
      %vm476 = vcmp.lt.s32.totalorder %v399, 1
      %v477 = vsel %vm476, %v473, %v475
      %v478 = vsel %vm476, %v475, %v473
      %v479 = vlaneseq
      %v480 = vshrl.u32 %v479, 7
      %v481 = vsub.s32 3, %v480
      %v482 = vrot.slane %v389, %v481
      %v483 = vlaneseq
      %v484 = vshrl.u32 %v483, 7
      %v485 = vsub.s32 3, %v484
      %v486 = vrot.slane %v390, %v485
      %v487 = vmul.f32 %v478, %v482
      %v488 = vmul.f32 %v477, %v486
      %489 = vset.pattern.permute.xlu0 3
      %490 = vperm.xlu0 %489, %v393
      %v491 = vpop.permute.xlu0 %490
      %v493 = vmul.f32 %v487, %v491
      %v494 = vmul.f32 %v488, %v491
      %v495 = vadd.f32 %v470, %v493
      %v496 = vadd.f32 %v471, %v494
      %497 = vset.pattern.permute.xlu0 4
      %498 = vperm.xlu0 %497, %v393
      %v499 = vpop.permute.xlu0 %498
      %v501 = vmul.f32 %v387, %v499
      %v502 = vmul.f32 %v388, %v499
      %v503 = vadd.f32 %v495, %v501
      %v504 = vadd.f32 %v496, %v502
      %505 = vrot.lane.b32.xlu0 %v387, 127
      %v506 = vpop.permute.xlu0 %505
      %507 = vrot.lane.b32.xlu0 %v388, 127
      %v508 = vpop.permute.xlu0 %507
      %vm509 = vcmp.lt.s32.totalorder %v399, 127
      %v510 = vsel %vm509, %v506, %v508
      %v511 = vsel %vm509, %v508, %v506
      %v512 = vlaneseq
      %v513 = vshrl.u32 %v512, 7
      %v514 = vsub.s32 5, %v513
      %v515 = vrot.slane %v389, %v514
      %v516 = vlaneseq
      %v517 = vshrl.u32 %v516, 7
      %v518 = vsub.s32 5, %v517
      %v519 = vrot.slane %v390, %v518
      %v520 = vmul.f32 %v510, %v515
      %v521 = vmul.f32 %v511, %v519
      %522 = vset.pattern.permute.xlu0 5
      %523 = vperm.xlu0 %522, %v393
      %v524 = vpop.permute.xlu0 %523
      %v526 = vmul.f32 %v520, %v524
      %v527 = vmul.f32 %v521, %v524
      %v528 = vadd.f32 %v503, %v526
      %v529 = vadd.f32 %v504, %v527
      %530 = vrot.lane.b32.xlu0 %v387, 113
      %v531 = vpop.permute.xlu0 %530
      %532 = vrot.lane.b32.xlu0 %v388, 113
      %v533 = vpop.permute.xlu0 %532
      %vm534 = vcmp.lt.s32.totalorder %v399, 113
      %v535 = vsel %vm534, %v531, %v533
      %v536 = vsel %vm534, %v533, %v531
      %v537 = vlaneseq
      %v538 = vshrl.u32 %v537, 7
      %v539 = vsub.s32 6, %v538
      %v540 = vrot.slane %v389, %v539
      %v541 = vlaneseq
      %v542 = vshrl.u32 %v541, 7
      %v543 = vsub.s32 6, %v542
      %v544 = vrot.slane %v390, %v543
      %v545 = vmul.f32 %v535, %v540
      %v546 = vmul.f32 %v536, %v544
      %547 = vset.pattern.permute.xlu0 6
      %548 = vperm.xlu0 %547, %v393
      %v549 = vpop.permute.xlu0 %548
      %v551 = vmul.f32 %v545, %v549
      %v552 = vmul.f32 %v546, %v549
      %v553 = vadd.f32 %v528, %v551
      %v554 = vadd.f32 %v529, %v552
      %555 = vrot.lane.b32.xlu0 %v387, 112
      %v556 = vpop.permute.xlu0 %555
      %557 = vrot.lane.b32.xlu0 %v388, 112
      %v558 = vpop.permute.xlu0 %557
      %vm559 = vcmp.lt.s32.totalorder %v399, 112
      %v560 = vsel %vm559, %v556, %v558
      %v561 = vsel %vm559, %v558, %v556
      %v562 = vlaneseq
      %v563 = vshrl.u32 %v562, 7
      %v564 = vsub.s32 7, %v563
      %v565 = vrot.slane %v389, %v564
      %v566 = vlaneseq
      %v567 = vshrl.u32 %v566, 7
      %v568 = vsub.s32 7, %v567
      %v569 = vrot.slane %v390, %v568
      %v570 = vmul.f32 %v560, %v565
      %v571 = vmul.f32 %v561, %v569
      %572 = vset.pattern.permute.xlu0 7
      %573 = vperm.xlu0 %572, %v393
      %v574 = vpop.permute.xlu0 %573
      %v576 = vmul.f32 %v570, %v574
      %v577 = vmul.f32 %v571, %v574
      %v578 = vadd.f32 %v553, %v576
      %v579 = vadd.f32 %v554, %v577
      %580 = vrot.lane.b32.xlu0 %v387, 111
      %v581 = vpop.permute.xlu0 %580
      %582 = vrot.lane.b32.xlu0 %v388, 111
      %v583 = vpop.permute.xlu0 %582
      %vm584 = vcmp.lt.s32.totalorder %v399, 111
      %v585 = vsel %vm584, %v581, %v583
      %v586 = vsel %vm584, %v583, %v581
      %v587 = vlaneseq
      %v588 = vshrl.u32 %v587, 7
      %v589 = vsub.s32 0, %v588
      %v590 = vrot.slane %v391, %v589
      %v591 = vlaneseq
      %v592 = vshrl.u32 %v591, 7
      %v593 = vsub.s32 0, %v592
      %v594 = vrot.slane %v392, %v593
      %v595 = vmul.f32 %v585, %v590
      %v596 = vmul.f32 %v586, %v594
      %597 = vset.pattern.permute.xlu0 8
      %598 = vperm.xlu0 %597, %v393
      %v599 = vpop.permute.xlu0 %598
      %v601 = vmul.f32 %v595, %v599
      %v602 = vmul.f32 %v596, %v599
      %v603 = vadd.f32 %v578, %v601
      %v604 = vadd.f32 %v579, %v602
      %v605 = vld [vmem:[%s5] sm:$0xff]
      %607 = vset.pattern.permute.xlu0 0
      %608 = vperm.xlu0 %607, %v605
      %v609 = vpop.permute.xlu0 %608
      %v611 = vadd.f32 %v603, %v609
      %v612 = vadd.f32 %v604, %v609
      %v613 = vmax.f32 %v611, 0.0
      %v614 = vmax.f32 %v612, 0.0
      %v615 = vmin.f32 %v613, 6.0
      %v616 = vmin.f32 %v614, 6.0
      %v617 = vld [vmem:[%s6] sm:$0x3]
      %v618 = vpack.c.bf16 %v615, %v615
      %v619 = vpack.c.bf16 %v616, %v616
      %vm620 = vcmask 64512
      %v622 = vsel %vm620, %v617, 0
      %vm624 = vcmask 1043456
      %v626 = vsel %vm624, %v618, 0
      %v629 = vsel %vm624, %v619, 0
      %631 = vmatprep.subr.bf16.mxu0 0
      %632 = vmatpush1.bf16.msra.mxu0 0
      %633 = vmatprep.subr.bf16.mxu0 0
      %634 = vmatpush1.bf16.msra.mxu0 0
      %635 = vmatprep.subr.bf16.mxu0 0
      %636 = vmatpush1.bf16.msra.mxu0 0
      %637 = vmatprep.subr.bf16.mxu0 0
      %638 = vmatpush1.bf16.msra.mxu0 0
      %639 = vmatprep.subr.bf16.mxu0 0
      %640 = vmatpush1.bf16.msra.mxu0 0
      %641 = vmatprep.subr.bf16.mxu0 0
      %642 = vmatpush1.bf16.msra.mxu0 0
      %643 = vmatprep.subr.bf16.mxu0 0
      %644 = vmatpush1.bf16.msra.mxu0 0
      %645 = vmatprep.subr.bf16.mxu0 %v629
      %646 = vmatpush1.bf16.msra.mxu0 %v626
      %647 = vmatprep.subr.bf16.mxu0 0
      %648 = vmatpush2.bf16.msra.mxu0 0
      %649 = vmatprep.subr.bf16.mxu0 0
      %650 = vmatpush2.bf16.msra.mxu0 0
      %651 = vmatprep.subr.bf16.mxu0 0
      %652 = vmatpush2.bf16.msra.mxu0 0
      %653 = vmatprep.subr.bf16.mxu0 0
      %654 = vmatpush2.bf16.msra.mxu0 0
      %655 = vmatprep.subr.bf16.mxu0 0
      %656 = vmatpush2.bf16.msra.mxu0 0
      %657 = vmatprep.subr.bf16.mxu0 0
      %658 = vmatpush2.bf16.msra.mxu0 0
      %659 = vmatprep.subr.bf16.mxu0 0
      %660 = vmatpush2.bf16.msra.mxu0 0
      %661 = vmatprep.subr.bf16.mxu0 0
      %662 = vmatpush2.bf16.msra.mxu0 0
      %663 = vmatprep.mubr.bf16.mxu0 0
      %664 = vmatmul.mubr.bf16.gmra.mxu0 %v622
      %v665 = vpop.f32.mrf.mxu0
      %v666 = vadd.f32 %v373, %v665
      %v667 = vpop.f32.mrf.mxu0
      %v668 = vadd.f32 %v375, %v667
      %v669 = vpop.f32.mrf.mxu0
      %v670 = vpop.f32.mrf.mxu0
      %671 = vdwg.mxu0
      %v672 = vld [vmem:[%s7] sm:$0xf]
      %674 = vset.pattern.permute.xlu0 0
      %675 = vperm.xlu0 %674, %v672
      %v676 = vpop.permute.xlu0 %675
      %v678 = vadd.f32 %v666, %v676
      %v679 = vadd.f32 %v668, %v676
      %v682 = vcombine.low %v678, %v679
      %684 = vst [vmem:[%s307] sm:$0xff] %v682
      %s685 = smul.u32 2, %s19
      %p686 = scmp.lt.s32.totalorder %s685, 3
      %s687 = scalar_select %p686, %s685, 3
      %s688 = smul.addr %s687, 4
      %s689 = scalar_lea.vmem %s8, %s688
      // Predicated region
      $region53: #{inverted_residual.1} parent=51 // pred_check
        %p690 = pneg %p210
      $region54: #{inverted_residual.1} parent=51 // pred_check_branch
        %692 = sbr.rel (%p690) target = $region56
      $region55: #{inverted_residual.1} parent=51 // pred_region
        %s693 = smul.u32 2, %s19
      $region56: #{inverted_residual.1} parent=51 // pred_fallthru
        _
    $region52: #{inverted_residual.1} parent=5 // pred_fallthru
      _
    %p694 = scmp.le.s32.totalorder 2, %s14
    // Predicated region
    $region57: #{inverted_residual.1} parent=5 // pred_check
      %p695 = pneg %p694
    $region58: #{inverted_residual.1} parent=5 // pred_check_branch
      %697 = sbr.rel (%p695) target = $region60
    $region59: #{inverted_residual.1} parent=5 // pred_region
      %s698 = ssub.s32 %s14, 2
      // Predicated region
      $region61: #{inverted_residual.1} parent=59 // pred_check
        %p699 = pneg %p216
      $region62: #{inverted_residual.1} parent=59 // pred_check_branch
        %701 = sbr.rel (%p699) target = $region64
      $region63: #{inverted_residual.1} parent=59 // pred_region
        %s702 = smul.u32 2, %s20
        %p703 = scmp.lt.s32.totalorder %s702, 3
        %s704 = scalar_select %p703, %s702, 3
        %s705 = smul.addr %s704, 4
        %s706 = scalar_lea.vmem %s8, %s705
      $region64: #{inverted_residual.1} parent=59 // pred_fallthru
        _
    $region60: #{inverted_residual.1} parent=5 // pred_fallthru
      _
  $region6: #{inverted_residual.1} parent=0 // loop_footer
    %s18 = sadd.s32 1, %s14
  $region7: #{inverted_residual.1} parent=0 // loop_footer_branch
    %13 = sbr.rel target = $region3
  $region8: #{inverted_residual.1} parent=0 // loop_exit
    _

</llo_original>
